<compile_context>
chip_gen: v6e
topology: v6e:2x2x1
jax: 0.10.0
libtpu: 0.0.40
codegen_flags: <defaults>
</compile_context>

<pallas_src>
import numpy as np
import jax
import jax.numpy as jnp
from jax import lax
from jax.experimental import pallas as pl
from jax.experimental.pallas import tpu as pltpu

# ----------------------------- config ---------------------------------------
B = 2
NUM_SEG = 16          # cfg.INPUT.NUM_SEGMENTS
FEAT_DIM = 32         # video feature dim
MAXL = 8              # max query length
W2V_DIM = 16          # word embedding dim
HIDDEN = 32           # shared hidden dim
WINDOW_WIDTHS = [4, 8]        # cfg.DATASETS.WINDOW_WIDTHS
WINDOW_OVERLAP = [0.5, 0.5]   # cfg.DATASETS.WINDOW_OVERLAP


def _align8(x):
    return ((x + 7) // 8) * 8


# --------------------- proposal generation (exact port) ---------------------
def generate_proposal(widths, overlap, num_segments):
    widths = np.array(widths)
    overlap = np.array(overlap)
    strides = (widths * (1 - overlap)).astype(int)
    prop_lens = ((num_segments - widths) / strides + 1).astype(int)
    proposal = []
    for prop_len, width, stride in zip(prop_lens, widths, strides):
        for k in range(prop_len):
            proposal.append([k * stride, k * stride + width - 1])
    return np.array(proposal, dtype=np.int32)


def proposal_pool_mask(proposals, num_segments):
    """[P, seg] matrix; row p = mean-pooling weights over proposal p's window."""
    P = proposals.shape[0]
    mask = np.zeros((P, num_segments), dtype=np.float32)
    for p, (s, e) in enumerate(proposals):
        mask[p, s:e + 1] = 1.0 / float(e - s + 1)
    return mask


# --------------------- constant slab packing (host side) --------------------
def make_slab_layout(Dv, Dw, H, P, seg):
    """Pack all grid-invariant small tensors into one (rows, cols) f32 slab.

    Every sub-block starts at a sublane-tile-aligned (multiple of 8) row
    offset so in-kernel static slices stay layout-friendly.
    """
    cols = max(H, seg, 8)
    off = {}
    cur = 0

    def take(name, nrows):
        nonlocal cur
        off[name] = cur
        cur = _align8(cur + nrows)

    take("wv", Dv)   # (Dv, H)   video-encoder weight
    take("bv", 1)    # (1, H)
    take("wq", Dw)   # (Dw, H)   query-encoder weight
    take("bq", 1)    # (1, H)
    take("pm", P)    # (P, seg)  proposal mean-pool mask
    take("pr", P)    # (P, 2)    proposal [start, end]
    take("wh", H)    # (H, 3)    fused head weight  [wiou | wbox]
    take("bh", 1)    # (1, 3)    fused head bias
    return off, cur, cols


def pack_slab(params, propmask, proposals_f, layout):
    off, rows, cols = layout
    Dv, H = params["wv"].shape
    Dw = params["wq"].shape[0]
    P, seg = propmask.shape
    whead = jnp.concatenate([params["wiou"], params["wbox"]], axis=1)   # (H, 3)
    bhead = jnp.concatenate([params["biou"], params["bbox"]], axis=1)   # (1, 3)

    slab = jnp.zeros((rows, cols), jnp.float32)
    slab = slab.at[off["wv"]:off["wv"] + Dv, :H].set(params["wv"])
    slab = slab.at[off["bv"]:off["bv"] + 1, :H].set(params["bv"])
    slab = slab.at[off["wq"]:off["wq"] + Dw, :H].set(params["wq"])
    slab = slab.at[off["bq"]:off["bq"] + 1, :H].set(params["bq"])
    slab = slab.at[off["pm"]:off["pm"] + P, :seg].set(propmask)
    slab = slab.at[off["pr"]:off["pr"] + P, :2].set(proposals_f)
    slab = slab.at[off["wh"]:off["wh"] + H, :3].set(whead)
    slab = slab.at[off["bh"]:off["bh"] + 1, :3].set(bhead)
    return slab


# ------------------------------ Pallas kernel --------------------------------
def make_fian_kernel(Bb, seg, Dv, maxL, Dw, H, P, off):
    scale = 1.0 / float(np.sqrt(H))
    inv_seg = 1.0 / float(seg)        # reference divides box by num_seg

    def kernel(feats_ref, queries_ref, wmask_ref, slab_ref, out_ref):
        # ---- unpack the constant slab (static, 8-aligned row slices) -------
        slab = slab_ref[...]
        wv = slab[off["wv"]:off["wv"] + Dv, :H]        # (Dv, H)
        bv = slab[off["bv"]:off["bv"] + 1, :H]         # (1, H)
        wq = slab[off["wq"]:off["wq"] + Dw, :H]        # (Dw, H)
        bq = slab[off["bq"]:off["bq"] + 1, :H]         # (1, H)
        pm = slab[off["pm"]:off["pm"] + P, :seg]       # (P, seg)
        props = slab[off["pr"]:off["pr"] + P, :2]      # (P, 2)
        wh = slab[off["wh"]:off["wh"] + H, :3]         # (H, 3)
        bh = slab[off["bh"]:off["bh"] + 1, :3]         # (1, 3)

        # ---- video / query encoders: one matmul each over the whole batch --
        feats = feats_ref[...].reshape(Bb * seg, Dv)       # (B*seg, Dv)
        queries = queries_ref[...].reshape(Bb * maxL, Dw)  # (B*maxL, Dw)
        wmask_all = wmask_ref[...]                         # (B, maxL)

        segf_all = jnp.dot(feats, wv,
                           preferred_element_type=jnp.float32) + bv    # (B*seg, H)
        qf_all = jnp.dot(queries, wq,
                         preferred_element_type=jnp.float32) + bq      # (B*maxL, H)

        # ---- per-batch multimodal encoder + prediction head (B is static) --
        for b in range(Bb):
            segf = segf_all[b * seg:(b + 1) * seg, :]        # (seg, H)
            qf = qf_all[b * maxL:(b + 1) * maxL, :]          # (maxL, H)
            wmask = wmask_all[b:b + 1, :]                    # (1, maxL)

            scores = lax.dot_general(segf, qf, (((1,), (1,)), ((), ())),
                                     preferred_element_type=jnp.float32) * scale
            scores = jnp.where(wmask > 0.0, scores, -1e30)   # (seg, maxL)
            m = jnp.max(scores, axis=-1, keepdims=True)
            e = jnp.exp(scores - m)
            attn = e * pl.reciprocal(jnp.sum(e, axis=-1, keepdims=True),
                                     approx=True)            # (seg, maxL)
            attended = jnp.dot(attn, qf,
                               preferred_element_type=jnp.float32)     # (seg, H)
            frame_embed = segf + attended                               # (seg, H)

            # proposal mean pooling as a matmul, then fused iou/box head
            pooled = jnp.dot(pm, frame_embed,
                             preferred_element_type=jnp.float32)        # (P, H)
            head = jnp.dot(pooled, wh,
                           preferred_element_type=jnp.float32) + bh     # (P, 3)
            iou = jax.nn.sigmoid(head[:, 0:1])                          # (P, 1)
            box = props + head[:, 1:3]                                  # (P, 2)

            # eval branch of FIAN.forward: clip(box / num_seg, 0, 1)
            loc_norm = jnp.clip(box * inv_seg, 0.0, 1.0)                # (P, 2)

            # merged output: [iou, box_s_norm, box_e_norm]
            out_ref[b] = jnp.concatenate([iou, loc_norm], axis=-1)      # (P, 3)

    return kernel


# ------------------------------ wrapper --------------------------------------
def fian_forward(feats, queries, wordmasks, params, propmask, proposals_f):
    Bb, seg, Dv = feats.shape
    _, maxL, Dw = queries.shape
    P = propmask.shape[0]
    H = params["wv"].shape[1]

    layout = make_slab_layout(Dv, Dw, H, P, seg)
    off, rows, cols = layout
    slab = pack_slab(params, propmask, proposals_f, layout)

    kernel = make_fian_kernel(Bb, seg, Dv, maxL, Dw, H, P, off)

    out = pl.pallas_call(
        kernel,
        out_shape=jax.ShapeDtypeStruct((Bb, P, 3), jnp.float32),
        grid=(1,),
        in_specs=[
            pl.BlockSpec((Bb, seg, Dv), lambda i: (0, 0, 0)),
            pl.BlockSpec((Bb, maxL, Dw), lambda i: (0, 0, 0)),
            pl.BlockSpec((Bb, maxL), lambda i: (0, 0)),
            pl.BlockSpec((rows, cols), lambda i: (0, 0)),
        ],
        out_specs=pl.BlockSpec((Bb, P, 3), lambda i: (0, 0, 0)),
        compiler_params=pltpu.CompilerParams(
            dimension_semantics=("arbitrary",)),
    )(feats, queries, wordmasks, slab)

    iou_predict = out[..., 0]          # (B, P)
    loc_norm_predict = out[..., 1:3]   # (B, P, 2)
    return loc_norm_predict, iou_predict


# ------------------------------ params ---------------------------------------
def init_params(key, Dv, Dw, H):
    ks = jax.random.split(key, 6)
    s = 0.1
    return {
        "wv": s * jax.random.normal(ks[0], (Dv, H), jnp.float32),
        "bv": jnp.zeros((1, H), jnp.float32),
        "wq": s * jax.random.normal(ks[1], (Dw, H), jnp.float32),
        "bq": jnp.zeros((1, H), jnp.float32),
        "wiou": s * jax.random.normal(ks[2], (H, 1), jnp.float32),
        "biou": jnp.zeros((1, 1), jnp.float32),
        "wbox": s * jax.random.normal(ks[3], (H, 2), jnp.float32),
        "bbox": jnp.zeros((1, 2), jnp.float32),
    }


# TODO(synk): the original build_* factories (video/query/multimodal encoders,
# predictor, loss) are not defined in the reference source; they are realized
# here as linear projections + masked cross-attention + proposal-pooled heads.
# The training branch (loss_dict) is not implemented; only the eval path is.

if __name__ == "__main__":
    key = jax.random.PRNGKey(0)
    k_feat, k_query, k_param = jax.random.split(key, 3)

    feats = jax.random.normal(k_feat, (B, NUM_SEG, FEAT_DIM), jnp.float32)
    queries = jax.random.normal(k_query, (B, MAXL, W2V_DIM), jnp.float32)

    # word masks: per-example query lengths (batches.wordmasks)
    querylens = np.array([5, 8], dtype=np.int32)
    wordmasks = (np.arange(MAXL)[None, :] < querylens[:, None]).astype(np.float32)
    wordmasks = jnp.asarray(wordmasks)

    # segmasks would all be ones at these shapes (seglens == NUM_SEG); the
    # simplified encoders do not consume them.

    proposals = generate_proposal(WINDOW_WIDTHS, WINDOW_OVERLAP, NUM_SEG)
    propmask = jnp.asarray(proposal_pool_mask(proposals, NUM_SEG))
    proposals_f = jnp.asarray(proposals.astype(np.float32))

    params = init_params(k_param, FEAT_DIM, W2V_DIM, HIDDEN)

    loc_norm_predict, iou_predict = fian_forward(
        feats, queries, wordmasks, params, propmask, proposals_f)
    jax.block_until_ready((loc_norm_predict, iou_predict))

    assert loc_norm_predict.shape == (B, proposals.shape[0], 2)
    assert iou_predict.shape == (B, proposals.shape[0])
    assert bool(jnp.all(loc_norm_predict >= 0.0)) and bool(jnp.all(loc_norm_predict <= 1.0))
    assert bool(jnp.all(iou_predict >= 0.0)) and bool(jnp.all(iou_predict <= 1.0))

    print("KERNEL_OK")
</pallas_src>

<mosaic_0001>
module attributes {stable_mosaic.version = 11 : i64} {
  func.func @kernel(%arg0: i32, %arg1: memref<2x16x32xf32, #tpu.memory_space<vmem>>, %arg2: memref<2x8x16xf32, #tpu.memory_space<vmem>>, %arg3: memref<2x8xf32, #tpu.memory_space<vmem>>, %arg4: memref<136x32xf32, #tpu.memory_space<vmem>>, %arg5: memref<2x10x3xf32, #tpu.memory_space<vmem>>) attributes {dimension_semantics = [#tpu.dimension_semantics<arbitrary>], iteration_bounds = array<i64: 1>, scalar_prefetch = 0 : i64, scratch_operands = 0 : i64, tpu.core_type = #tpu.core_type<tc>, window_params = [{pipeline_mode = #tpu.pipeline_mode<synchronous>, transform_indices = @transform_0, window_bounds = array<i64: 2, 16, 32>}, {pipeline_mode = #tpu.pipeline_mode<synchronous>, transform_indices = @transform_1, window_bounds = array<i64: 2, 8, 16>}, {pipeline_mode = #tpu.pipeline_mode<synchronous>, transform_indices = @transform_2, window_bounds = array<i64: 2, 8>}, {pipeline_mode = #tpu.pipeline_mode<synchronous>, transform_indices = @transform_3, window_bounds = array<i64: 136, 32>}, {pipeline_mode = #tpu.pipeline_mode<synchronous>, transform_indices = @transform_4, window_bounds = array<i64: 2, 10, 3>}]} {
    %c0 = arith.constant 0 : index
    %c0_0 = arith.constant 0 : index
    %0 = vector.load %arg4[%c0, %c0_0] : memref<136x32xf32, #tpu.memory_space<vmem>>, vector<136x32xf32>
    %1 = vector.extract_strided_slice %0 {offsets = [0, 0], sizes = [32, 32], strides = [1, 1]} : vector<136x32xf32> to vector<32x32xf32>
    %2 = vector.extract_strided_slice %0 {offsets = [32, 0], sizes = [1, 32], strides = [1, 1]} : vector<136x32xf32> to vector<1x32xf32>
    %3 = vector.extract_strided_slice %0 {offsets = [40, 0], sizes = [16, 32], strides = [1, 1]} : vector<136x32xf32> to vector<16x32xf32>
    %4 = vector.extract_strided_slice %0 {offsets = [56, 0], sizes = [1, 32], strides = [1, 1]} : vector<136x32xf32> to vector<1x32xf32>
    %5 = vector.extract_strided_slice %0 {offsets = [64, 0], sizes = [10, 16], strides = [1, 1]} : vector<136x32xf32> to vector<10x16xf32>
    %6 = vector.extract_strided_slice %0 {offsets = [80, 0], sizes = [10, 2], strides = [1, 1]} : vector<136x32xf32> to vector<10x2xf32>
    %7 = vector.extract_strided_slice %0 {offsets = [96, 0], sizes = [32, 3], strides = [1, 1]} : vector<136x32xf32> to vector<32x3xf32>
    %8 = vector.extract_strided_slice %0 {offsets = [128, 0], sizes = [1, 3], strides = [1, 1]} : vector<136x32xf32> to vector<1x3xf32>
    %c0_1 = arith.constant 0 : index
    %c0_2 = arith.constant 0 : index
    %c0_3 = arith.constant 0 : index
    %9 = vector.load %arg1[%c0_1, %c0_2, %c0_3] : memref<2x16x32xf32, #tpu.memory_space<vmem>>, vector<2x16x32xf32>
    %10 = vector.shape_cast %9 : vector<2x16x32xf32> to vector<32x32xf32>
    %c0_4 = arith.constant 0 : index
    %c0_5 = arith.constant 0 : index
    %c0_6 = arith.constant 0 : index
    %11 = vector.load %arg2[%c0_4, %c0_5, %c0_6] : memref<2x8x16xf32, #tpu.memory_space<vmem>>, vector<2x8x16xf32>
    %12 = vector.shape_cast %11 : vector<2x8x16xf32> to vector<16x16xf32>
    %c0_7 = arith.constant 0 : index
    %c0_8 = arith.constant 0 : index
    %13 = vector.load %arg3[%c0_7, %c0_8] : memref<2x8xf32, #tpu.memory_space<vmem>>, vector<2x8xf32>
    %cst = arith.constant dense<0.000000e+00> : vector<32x32xf32>
    %14 = tpu.matmul %10, %1, %cst {dimension_numbers = #tpu.dot_dimension_numbers<[1], [0], [0], [1], [0, 0, 1, 1], [], []>} : vector<32x32xf32>, vector<32x32xf32>, vector<32x32xf32> -> vector<32x32xf32>
    %15 = vector.broadcast %2 : vector<1x32xf32> to vector<32x32xf32>
    %16 = arith.addf %14, %15 : vector<32x32xf32>
    %cst_9 = arith.constant dense<0.000000e+00> : vector<16x32xf32>
    %17 = tpu.matmul %12, %3, %cst_9 {dimension_numbers = #tpu.dot_dimension_numbers<[1], [0], [0], [1], [0, 0, 1, 1], [], []>} : vector<16x16xf32>, vector<16x32xf32>, vector<16x32xf32> -> vector<16x32xf32>
    %18 = vector.broadcast %4 : vector<1x32xf32> to vector<16x32xf32>
    %19 = arith.addf %17, %18 : vector<16x32xf32>
    %20 = vector.extract_strided_slice %16 {offsets = [0, 0], sizes = [16, 32], strides = [1, 1]} : vector<32x32xf32> to vector<16x32xf32>
    %21 = vector.extract_strided_slice %19 {offsets = [0, 0], sizes = [8, 32], strides = [1, 1]} : vector<16x32xf32> to vector<8x32xf32>
    %22 = vector.extract_strided_slice %13 {offsets = [0, 0], sizes = [1, 8], strides = [1, 1]} : vector<2x8xf32> to vector<1x8xf32>
    %cst_10 = arith.constant dense<0.000000e+00> : vector<16x8xf32>
    %23 = tpu.matmul %20, %21, %cst_10 {dimension_numbers = #tpu.dot_dimension_numbers<[1], [1], [0], [0], [0, 0, 1, 0], [], []>} : vector<16x32xf32>, vector<8x32xf32>, vector<16x8xf32> -> vector<16x8xf32>
    %cst_11 = arith.constant 0.176776692 : f32
    %24 = vector.broadcast %cst_11 : f32 to vector<16x8xf32>
    %25 = arith.mulf %23, %24 : vector<16x8xf32>
    %cst_12 = arith.constant 0.000000e+00 : f32
    %26 = vector.broadcast %cst_12 : f32 to vector<1x8xf32>
    %27 = arith.cmpf ogt, %22, %26 : vector<1x8xf32>
    %cst_13 = arith.constant -1.000000e+30 : f32
    %28 = vector.shape_cast %27 : vector<1x8xi1> to vector<1x8xi1>
    %29 = vector.broadcast %28 : vector<1x8xi1> to vector<16x8xi1>
    %30 = vector.broadcast %cst_13 : f32 to vector<16x8xf32>
    %31 = arith.select %29, %25, %30 : vector<16x8xi1>, vector<16x8xf32>
    %cst_14 = arith.constant dense<0xFF800000> : vector<16xf32>
    %32 = vector.multi_reduction <maximumf>, %31, %cst_14 [1] : vector<16x8xf32> to vector<16xf32>
    %33 = vector.shape_cast %32 : vector<16xf32> to vector<16x1xf32>
    %34 = vector.broadcast %33 : vector<16x1xf32> to vector<16x8xf32>
    %35 = arith.subf %31, %34 : vector<16x8xf32>
    %36 = math.exp %35 : vector<16x8xf32>
    %cst_15 = arith.constant dense<0.000000e+00> : vector<16xf32>
    %37 = vector.multi_reduction <add>, %36, %cst_15 [1] : vector<16x8xf32> to vector<16xf32>
    %38 = vector.shape_cast %37 : vector<16xf32> to vector<16x1xf32>
    %39 = tpu.reciprocal %38 {approx = true} : vector<16x1xf32> -> vector<16x1xf32>
    %40 = vector.broadcast %39 : vector<16x1xf32> to vector<16x8xf32>
    %41 = arith.mulf %36, %40 : vector<16x8xf32>
    %cst_16 = arith.constant dense<0.000000e+00> : vector<16x32xf32>
    %42 = tpu.matmul %41, %21, %cst_16 {dimension_numbers = #tpu.dot_dimension_numbers<[1], [0], [0], [1], [0, 0, 1, 1], [], []>} : vector<16x8xf32>, vector<8x32xf32>, vector<16x32xf32> -> vector<16x32xf32>
    %43 = arith.addf %20, %42 : vector<16x32xf32>
    %cst_17 = arith.constant dense<0.000000e+00> : vector<10x32xf32>
    %44 = tpu.matmul %5, %43, %cst_17 {dimension_numbers = #tpu.dot_dimension_numbers<[1], [0], [0], [1], [0, 0, 1, 1], [], []>} : vector<10x16xf32>, vector<16x32xf32>, vector<10x32xf32> -> vector<10x32xf32>
    %cst_18 = arith.constant dense<0.000000e+00> : vector<10x3xf32>
    %45 = tpu.matmul %44, %7, %cst_18 {dimension_numbers = #tpu.dot_dimension_numbers<[1], [0], [0], [1], [0, 0, 1, 1], [], []>} : vector<10x32xf32>, vector<32x3xf32>, vector<10x3xf32> -> vector<10x3xf32>
    %46 = vector.broadcast %8 : vector<1x3xf32> to vector<10x3xf32>
    %47 = arith.addf %45, %46 : vector<10x3xf32>
    %48 = vector.extract_strided_slice %47 {offsets = [0, 0], sizes = [10, 1], strides = [1, 1]} : vector<10x3xf32> to vector<10x1xf32>
    %49 = arith.negf %48 : vector<10x1xf32>
    %50 = math.exp %49 : vector<10x1xf32>
    %cst_19 = arith.constant 1.000000e+00 : f32
    %51 = vector.broadcast %cst_19 : f32 to vector<10x1xf32>
    %52 = arith.addf %51, %50 : vector<10x1xf32>
    %53 = arith.divf %51, %52 : vector<10x1xf32>
    %54 = vector.extract_strided_slice %47 {offsets = [0, 1], sizes = [10, 2], strides = [1, 1]} : vector<10x3xf32> to vector<10x2xf32>
    %55 = arith.addf %6, %54 : vector<10x2xf32>
    %cst_20 = arith.constant 6.250000e-02 : f32
    %56 = vector.broadcast %cst_20 : f32 to vector<10x2xf32>
    %57 = arith.mulf %55, %56 : vector<10x2xf32>
    %cst_21 = arith.constant 0.000000e+00 : f32
    %cst_22 = arith.constant 1.000000e+00 : f32
    %58 = vector.broadcast %cst_21 : f32 to vector<10x2xf32>
    %59 = arith.maximumf %58, %57 : vector<10x2xf32>
    %60 = vector.broadcast %cst_22 : f32 to vector<10x2xf32>
    %61 = arith.minimumf %60, %59 : vector<10x2xf32>
    %62 = tpu.concatenate %53, %61 in 1 : vector<10x1xf32>, vector<10x2xf32> -> vector<10x3xf32>
    %c0_23 = arith.constant 0 : index
    %c0_24 = arith.constant 0 : index
    %c0_25 = arith.constant 0 : index
    %63 = vector.load %arg5[%c0_23, %c0_24, %c0_25] : memref<2x10x3xf32, #tpu.memory_space<vmem>>, vector<1x10x3xf32>
    %64 = vector.shape_cast %63 : vector<1x10x3xf32> to vector<10x3xf32>
    %65 = vector.shape_cast %62 : vector<10x3xf32> to vector<1x10x3xf32>
    tpu.vector_store %arg5[%c0_23, %c0_24, %c0_25], %65 {strides = array<i32>} : memref<2x10x3xf32, #tpu.memory_space<vmem>>, vector<1x10x3xf32>,
    %66 = vector.extract_strided_slice %16 {offsets = [16, 0], sizes = [16, 32], strides = [1, 1]} : vector<32x32xf32> to vector<16x32xf32>
    %67 = vector.extract_strided_slice %19 {offsets = [8, 0], sizes = [8, 32], strides = [1, 1]} : vector<16x32xf32> to vector<8x32xf32>
    %68 = vector.extract_strided_slice %13 {offsets = [1, 0], sizes = [1, 8], strides = [1, 1]} : vector<2x8xf32> to vector<1x8xf32>
    %cst_26 = arith.constant dense<0.000000e+00> : vector<16x8xf32>
    %69 = tpu.matmul %66, %67, %cst_26 {dimension_numbers = #tpu.dot_dimension_numbers<[1], [1], [0], [0], [0, 0, 1, 0], [], []>} : vector<16x32xf32>, vector<8x32xf32>, vector<16x8xf32> -> vector<16x8xf32>
    %cst_27 = arith.constant 0.176776692 : f32
    %70 = vector.broadcast %cst_27 : f32 to vector<16x8xf32>
    %71 = arith.mulf %69, %70 : vector<16x8xf32>
    %cst_28 = arith.constant 0.000000e+00 : f32
    %72 = vector.broadcast %cst_28 : f32 to vector<1x8xf32>
    %73 = arith.cmpf ogt, %68, %72 : vector<1x8xf32>
    %cst_29 = arith.constant -1.000000e+30 : f32
    %74 = vector.shape_cast %73 : vector<1x8xi1> to vector<1x8xi1>
    %75 = vector.broadcast %74 : vector<1x8xi1> to vector<16x8xi1>
    %76 = vector.broadcast %cst_29 : f32 to vector<16x8xf32>
    %77 = arith.select %75, %71, %76 : vector<16x8xi1>, vector<16x8xf32>
    %cst_30 = arith.constant dense<0xFF800000> : vector<16xf32>
    %78 = vector.multi_reduction <maximumf>, %77, %cst_30 [1] : vector<16x8xf32> to vector<16xf32>
    %79 = vector.shape_cast %78 : vector<16xf32> to vector<16x1xf32>
    %80 = vector.broadcast %79 : vector<16x1xf32> to vector<16x8xf32>
    %81 = arith.subf %77, %80 : vector<16x8xf32>
    %82 = math.exp %81 : vector<16x8xf32>
    %cst_31 = arith.constant dense<0.000000e+00> : vector<16xf32>
    %83 = vector.multi_reduction <add>, %82, %cst_31 [1] : vector<16x8xf32> to vector<16xf32>
    %84 = vector.shape_cast %83 : vector<16xf32> to vector<16x1xf32>
    %85 = tpu.reciprocal %84 {approx = true} : vector<16x1xf32> -> vector<16x1xf32>
    %86 = vector.broadcast %85 : vector<16x1xf32> to vector<16x8xf32>
    %87 = arith.mulf %82, %86 : vector<16x8xf32>
    %cst_32 = arith.constant dense<0.000000e+00> : vector<16x32xf32>
    %88 = tpu.matmul %87, %67, %cst_32 {dimension_numbers = #tpu.dot_dimension_numbers<[1], [0], [0], [1], [0, 0, 1, 1], [], []>} : vector<16x8xf32>, vector<8x32xf32>, vector<16x32xf32> -> vector<16x32xf32>
    %89 = arith.addf %66, %88 : vector<16x32xf32>
    %cst_33 = arith.constant dense<0.000000e+00> : vector<10x32xf32>
    %90 = tpu.matmul %5, %89, %cst_33 {dimension_numbers = #tpu.dot_dimension_numbers<[1], [0], [0], [1], [0, 0, 1, 1], [], []>} : vector<10x16xf32>, vector<16x32xf32>, vector<10x32xf32> -> vector<10x32xf32>
    %cst_34 = arith.constant dense<0.000000e+00> : vector<10x3xf32>
    %91 = tpu.matmul %90, %7, %cst_34 {dimension_numbers = #tpu.dot_dimension_numbers<[1], [0], [0], [1], [0, 0, 1, 1], [], []>} : vector<10x32xf32>, vector<32x3xf32>, vector<10x3xf32> -> vector<10x3xf32>
    %92 = vector.broadcast %8 : vector<1x3xf32> to vector<10x3xf32>
    %93 = arith.addf %91, %92 : vector<10x3xf32>
    %94 = vector.extract_strided_slice %93 {offsets = [0, 0], sizes = [10, 1], strides = [1, 1]} : vector<10x3xf32> to vector<10x1xf32>
    %95 = arith.negf %94 : vector<10x1xf32>
    %96 = math.exp %95 : vector<10x1xf32>
    %cst_35 = arith.constant 1.000000e+00 : f32
    %97 = vector.broadcast %cst_35 : f32 to vector<10x1xf32>
    %98 = arith.addf %97, %96 : vector<10x1xf32>
    %99 = arith.divf %97, %98 : vector<10x1xf32>
    %100 = vector.extract_strided_slice %93 {offsets = [0, 1], sizes = [10, 2], strides = [1, 1]} : vector<10x3xf32> to vector<10x2xf32>
    %101 = arith.addf %6, %100 : vector<10x2xf32>
    %cst_36 = arith.constant 6.250000e-02 : f32
    %102 = vector.broadcast %cst_36 : f32 to vector<10x2xf32>
    %103 = arith.mulf %101, %102 : vector<10x2xf32>
    %cst_37 = arith.constant 0.000000e+00 : f32
    %cst_38 = arith.constant 1.000000e+00 : f32
    %104 = vector.broadcast %cst_37 : f32 to vector<10x2xf32>
    %105 = arith.maximumf %104, %103 : vector<10x2xf32>
    %106 = vector.broadcast %cst_38 : f32 to vector<10x2xf32>
    %107 = arith.minimumf %106, %105 : vector<10x2xf32>
    %108 = tpu.concatenate %99, %107 in 1 : vector<10x1xf32>, vector<10x2xf32> -> vector<10x3xf32>
    %c1 = arith.constant 1 : index
    %c0_39 = arith.constant 0 : index
    %c0_40 = arith.constant 0 : index
    %109 = vector.load %arg5[%c1, %c0_39, %c0_40] : memref<2x10x3xf32, #tpu.memory_space<vmem>>, vector<1x10x3xf32>
    %110 = vector.shape_cast %109 : vector<1x10x3xf32> to vector<10x3xf32>
    %111 = vector.shape_cast %108 : vector<10x3xf32> to vector<1x10x3xf32>
    tpu.vector_store %arg5[%c1, %c0_39, %c0_40], %111 {strides = array<i32>} : memref<2x10x3xf32, #tpu.memory_space<vmem>>, vector<1x10x3xf32>,
    return
  }
  func.func @transform_0(%arg0: i32) -> (i32, i32, i32) {
    %c0_i32 = arith.constant 0 : i32
    %c0_i32_0 = arith.constant 0 : i32
    %c0_i32_1 = arith.constant 0 : i32
    %c0_i32_2 = arith.constant 0 : i32
    return %c0_i32, %c0_i32_0, %c0_i32_1 : i32, i32, i32
  }
  func.func @transform_1(%arg0: i32) -> (i32, i32, i32) {
    %c0_i32 = arith.constant 0 : i32
    %c0_i32_0 = arith.constant 0 : i32
    %c0_i32_1 = arith.constant 0 : i32
    %c0_i32_2 = arith.constant 0 : i32
    return %c0_i32, %c0_i32_0, %c0_i32_1 : i32, i32, i32
  }
  func.func @transform_2(%arg0: i32) -> (i32, i32) {
    %c0_i32 = arith.constant 0 : i32
    %c0_i32_0 = arith.constant 0 : i32
    %c0_i32_1 = arith.constant 0 : i32
    return %c0_i32, %c0_i32_0 : i32, i32
  }
  func.func @transform_3(%arg0: i32) -> (i32, i32) {
    %c0_i32 = arith.constant 0 : i32
    %c0_i32_0 = arith.constant 0 : i32
    %c0_i32_1 = arith.constant 0 : i32
    return %c0_i32, %c0_i32_0 : i32, i32
  }
  func.func @transform_4(%arg0: i32) -> (i32, i32, i32) {
    %c0_i32 = arith.constant 0 : i32
    %c0_i32_0 = arith.constant 0 : i32
    %c0_i32_1 = arith.constant 0 : i32
    %c0_i32_2 = arith.constant 0 : i32
    return %c0_i32, %c0_i32_0, %c0_i32_1 : i32, i32, i32
  }
}

</mosaic_0001>

<llo_original>
// kernel: tpu_custom_call.1
$region0: #{tpu_custom_call.1}
  #allocation0 [shape = 'u32[]', space=smem, size = 0x4, offset = 0x4, fixed_abs, tag = 'smem constant byte address 0x4 - core index']
  #allocation1 [shape = 'u32[144,128]{1,0:T(1,128)}', space=vmem, size = 0x12000, scoped, tag = 'internal scratch']
  %s0 = inlined_call_operand.vmem [shape: f32[2,16,32], index: 0, kind: input, shape index: {}]
  %s1 = inlined_call_operand.vmem [shape: f32[2,8,16], index: 1, kind: input, shape index: {}]
  %s2 = inlined_call_operand.vmem [shape: f32[2,8], index: 2, kind: input, shape index: {}]
  %s3 = inlined_call_operand.vmem [shape: f32[136,32], index: 3, kind: input, shape index: {}]
  %s4 = inlined_call_operand.vmem [shape: f32[2,10,3], index: 4, kind: output, shape index: {}]
  %s5 = sld [smem:[#allocation0]]
  $region26: #{tpu_custom_call.1} parent=0
    _
  %s7 = ssub.s32 1, %s5
  %s8 = scalar_select 0, %s7, %s5
  // Predicated region
  $region2: #{tpu_custom_call.1} parent=0 // pred_check
    _
  $region3: #{tpu_custom_call.1} parent=0 // pred_check_branch
    %10 = sbr.rel (0) target = $region5
  $region4: #{tpu_custom_call.1} parent=0 // pred_region
    _
  $region5: #{tpu_custom_call.1} parent=0 // pred_fallthru
    _
  // Predicated region
  $region6: #{tpu_custom_call.1} parent=0 // pred_check
    _
  $region7: #{tpu_custom_call.1} parent=0 // pred_check_branch
    %12 = sbr.rel (0) target = $region9
  $region8: #{tpu_custom_call.1} parent=0 // pred_region
    _
  $region9: #{tpu_custom_call.1} parent=0 // pred_fallthru
    _
  // Predicated region
  $region10: #{tpu_custom_call.1} parent=0 // pred_check
    _
  $region11: #{tpu_custom_call.1} parent=0 // pred_check_branch
    %14 = sbr.rel (0) target = $region13
  $region12: #{tpu_custom_call.1} parent=0 // pred_region
    _
  $region13: #{tpu_custom_call.1} parent=0 // pred_fallthru
    _
  // Predicated region
  $region14: #{tpu_custom_call.1} parent=0 // pred_check
    _
  $region15: #{tpu_custom_call.1} parent=0 // pred_check_branch
    %16 = sbr.rel (0) target = $region17
  $region16: #{tpu_custom_call.1} parent=0 // pred_region
    _
  $region17: #{tpu_custom_call.1} parent=0 // pred_fallthru
    _
  %v17 = vld [vmem:[%s3] sm:$0xff]
  %v18 = vld [vmem:[%s3 + $0x8] sm:$0xff]
  %v19 = vld [vmem:[%s3 + $0x10] sm:$0xff]
  %v20 = vld [vmem:[%s3 + $0x18] sm:$0xff]
  %v21 = vld [vmem:[%s3 + $0x20] sm:$0xff]
  %v22 = vld [vmem:[%s3 + $0x28] sm:$0xff]
  %v23 = vld [vmem:[%s3 + $0x30] sm:$0xff]
  %v24 = vld [vmem:[%s3 + $0x38] sm:$0xff]
  %v25 = vld [vmem:[%s3 + $0x40] sm:$0xff]
  %v26 = vld [vmem:[%s3 + $0x48] sm:$0xff]
  %v27 = vld [vmem:[%s3 + $0x50] sm:$0xff]
  %v28 = vld [vmem:[%s3 + $0x58] sm:$0xff]
  %v29 = vld [vmem:[%s3 + $0x60] sm:$0xff]
  %v30 = vld [vmem:[%s3 + $0x68] sm:$0xff]
  %v31 = vld [vmem:[%s3 + $0x70] sm:$0xff]
  %v32 = vld [vmem:[%s3 + $0x78] sm:$0xff]
  %v33 = vld [vmem:[%s3 + $0x80] sm:$0xff]
  %v34 = vld [vmem:[%s0] sm:$0xff]
  %v35 = vld [vmem:[%s0 + $0x8] sm:$0xff]
  %v36 = vld [vmem:[%s0 + $0x10] sm:$0xff]
  %v37 = vld [vmem:[%s0 + $0x18] sm:$0xff]
  %v38 = vld [vmem:[%s1] sm:$0xff]
  %v39 = vld [vmem:[%s1 + $0x8] sm:$0xff]
  %v40 = vld [vmem:[%s2] sm:$0x3]
  %v41 = vlaneseq
  %v42 = vshrl.u32 %v41, 7
  %v43 = vsub.s32 0, %v42
  %v44 = vrot.slane %v21, %v43
  %vm45 = vcmask 261120
  %v47 = vsel %vm45, %v34, 0
  %v50 = vsel %vm45, %v35, 0
  %v53 = vsel %vm45, %v36, 0
  %v56 = vsel %vm45, %v37, 0
  %58 = vmatprep.subr.mxu0 0.0
  %59 = vmatpush1.msra.mxu0 0.0
  %60 = vmatprep.subr.mxu0 0.0
  %61 = vmatpush1.msra.mxu0 0.0
  %62 = vmatprep.subr.mxu0 0.0
  %63 = vmatpush1.msra.mxu0 0.0
  %64 = vmatprep.subr.mxu0 0.0
  %65 = vmatpush1.msra.mxu0 0.0
  %66 = vmatprep.subr.mxu0 0.0
  %67 = vmatpush1.msra.mxu0 0.0
  %68 = vmatprep.subr.mxu0 0.0
  %69 = vmatpush1.msra.mxu0 0.0
  %70 = vmatprep.subr.mxu0 0.0
  %71 = vmatpush1.msra.mxu0 0.0
  %72 = vmatprep.subr.mxu0 0.0
  %73 = vmatpush1.msra.mxu0 0.0
  %74 = vmatprep.subr.mxu0 0.0
  %75 = vmatpush1.msra.mxu0 0.0
  %76 = vmatprep.subr.mxu0 0.0
  %77 = vmatpush1.msra.mxu0 0.0
  %78 = vmatprep.subr.mxu0 0.0
  %79 = vmatpush1.msra.mxu0 0.0
  %80 = vmatprep.subr.mxu0 0.0
  %81 = vmatpush1.msra.mxu0 0.0
  %82 = vmatprep.subr.mxu0 0.0
  %83 = vmatpush1.msra.mxu0 %v20
  %84 = vmatprep.subr.mxu0 0.0
  %85 = vmatpush1.msra.mxu0 %v19
  %86 = vmatprep.subr.mxu0 0.0
  %87 = vmatpush1.msra.mxu0 %v18
  %88 = vmatprep.subr.mxu0 0.0
  %89 = vmatpush1.msra.mxu0 %v17
  %90 = vmatprep.subr.mxu0 0.0
  %91 = vmatpush2.msra.mxu0 0.0
  %92 = vmatprep.subr.mxu0 0.0
  %93 = vmatpush2.msra.mxu0 0.0
  %94 = vmatprep.subr.mxu0 0.0
  %95 = vmatpush2.msra.mxu0 0.0
  %96 = vmatprep.subr.mxu0 0.0
  %97 = vmatpush2.msra.mxu0 0.0
  %98 = vmatprep.subr.mxu0 0.0
  %99 = vmatpush2.msra.mxu0 0.0
  %100 = vmatprep.subr.mxu0 0.0
  %101 = vmatpush2.msra.mxu0 0.0
  %102 = vmatprep.subr.mxu0 0.0
  %103 = vmatpush2.msra.mxu0 0.0
  %104 = vmatprep.subr.mxu0 0.0
  %105 = vmatpush2.msra.mxu0 0.0
  %106 = vmatprep.subr.mxu0 0.0
  %107 = vmatpush2.msra.mxu0 0.0
  %108 = vmatprep.subr.mxu0 0.0
  %109 = vmatpush2.msra.mxu0 0.0
  %110 = vmatprep.subr.mxu0 0.0
  %111 = vmatpush2.msra.mxu0 0.0
  %112 = vmatprep.subr.mxu0 0.0
  %113 = vmatpush2.msra.mxu0 0.0
  %114 = vmatprep.subr.mxu0 0.0
  %115 = vmatpush2.msra.mxu0 0.0
  %116 = vmatprep.subr.mxu0 0.0
  %117 = vmatpush2.msra.mxu0 0.0
  %118 = vmatprep.subr.mxu0 0.0
  %119 = vmatpush2.msra.mxu0 0.0
  %120 = vmatprep.subr.mxu0 0.0
  %121 = vmatpush2.msra.mxu0 0.0
  %122 = vmatprep.mubr.f32.mxu0 0.0
  %123 = vmatmul.mubr.f32.gmra.mxu0 %v47
  %v124 = vpop.f32.mrf.mxu0
  %v125 = vadd.f32 %v44, %v124
  %v126 = vpop.f32.mrf.mxu0
  %127 = vmatprep.mubr.f32.mxu0 0.0
  %128 = vmatmul.mubr.f32.gmra.mxu0 %v50
  %v129 = vpop.f32.mrf.mxu0
  %v130 = vadd.f32 %v44, %v129
  %v131 = vpop.f32.mrf.mxu0
  %132 = vmatprep.mubr.f32.mxu0 0.0
  %133 = vmatmul.mubr.f32.gmra.mxu0 %v53
  %v134 = vpop.f32.mrf.mxu0
  %v135 = vadd.f32 %v44, %v134
  %v136 = vpop.f32.mrf.mxu0
  %137 = vmatprep.mubr.f32.mxu0 0.0
  %138 = vmatmul.mubr.f32.gmra.mxu0 %v56
  %v139 = vpop.f32.mrf.mxu0
  %v140 = vadd.f32 %v44, %v139
  %v141 = vpop.f32.mrf.mxu0
  %142 = vdwg.mxu0
  %v143 = vlaneseq
  %v144 = vshrl.u32 %v143, 7
  %v145 = vsub.s32 0, %v144
  %v146 = vrot.slane %v24, %v145
  %vm147 = vcmask 130048
  %v149 = vsel %vm147, %v38, 0
  %v152 = vsel %vm147, %v39, 0
  %154 = vmatprep.subr.mxu0 0.0
  %155 = vmatpush1.msra.mxu0 0.0
  %156 = vmatprep.subr.mxu0 0.0
  %157 = vmatpush1.msra.mxu0 0.0
  %158 = vmatprep.subr.mxu0 0.0
  %159 = vmatpush1.msra.mxu0 0.0
  %160 = vmatprep.subr.mxu0 0.0
  %161 = vmatpush1.msra.mxu0 0.0
  %162 = vmatprep.subr.mxu0 0.0
  %163 = vmatpush1.msra.mxu0 0.0
  %164 = vmatprep.subr.mxu0 0.0
  %165 = vmatpush1.msra.mxu0 0.0
  %166 = vmatprep.subr.mxu0 0.0
  %167 = vmatpush1.msra.mxu0 0.0
  %168 = vmatprep.subr.mxu0 0.0
  %169 = vmatpush1.msra.mxu0 0.0
  %170 = vmatprep.subr.mxu0 0.0
  %171 = vmatpush1.msra.mxu0 0.0
  %172 = vmatprep.subr.mxu0 0.0
  %173 = vmatpush1.msra.mxu0 0.0
  %174 = vmatprep.subr.mxu0 0.0
  %175 = vmatpush1.msra.mxu0 0.0
  %176 = vmatprep.subr.mxu0 0.0
  %177 = vmatpush1.msra.mxu0 0.0
  %178 = vmatprep.subr.mxu0 0.0
  %179 = vmatpush1.msra.mxu0 0.0
  %180 = vmatprep.subr.mxu0 0.0
  %181 = vmatpush1.msra.mxu0 0.0
  %182 = vmatprep.subr.mxu0 0.0
  %183 = vmatpush1.msra.mxu0 %v23
  %184 = vmatprep.subr.mxu0 0.0
  %185 = vmatpush1.msra.mxu0 %v22
  %186 = vmatprep.subr.mxu0 0.0
  %187 = vmatpush2.msra.mxu0 0.0
  %188 = vmatprep.subr.mxu0 0.0
  %189 = vmatpush2.msra.mxu0 0.0
  %190 = vmatprep.subr.mxu0 0.0
  %191 = vmatpush2.msra.mxu0 0.0
  %192 = vmatprep.subr.mxu0 0.0
  %193 = vmatpush2.msra.mxu0 0.0
  %194 = vmatprep.subr.mxu0 0.0
  %195 = vmatpush2.msra.mxu0 0.0
  %196 = vmatprep.subr.mxu0 0.0
  %197 = vmatpush2.msra.mxu0 0.0
  %198 = vmatprep.subr.mxu0 0.0
  %199 = vmatpush2.msra.mxu0 0.0
  %200 = vmatprep.subr.mxu0 0.0
  %201 = vmatpush2.msra.mxu0 0.0
  %202 = vmatprep.subr.mxu0 0.0
  %203 = vmatpush2.msra.mxu0 0.0
  %204 = vmatprep.subr.mxu0 0.0
  %205 = vmatpush2.msra.mxu0 0.0
  %206 = vmatprep.subr.mxu0 0.0
  %207 = vmatpush2.msra.mxu0 0.0
  %208 = vmatprep.subr.mxu0 0.0
  %209 = vmatpush2.msra.mxu0 0.0
  %210 = vmatprep.subr.mxu0 0.0
  %211 = vmatpush2.msra.mxu0 0.0
  %212 = vmatprep.subr.mxu0 0.0
  %213 = vmatpush2.msra.mxu0 0.0
  %214 = vmatprep.subr.mxu0 0.0
  %215 = vmatpush2.msra.mxu0 0.0
  %216 = vmatprep.subr.mxu0 0.0
  %217 = vmatpush2.msra.mxu0 0.0
  %218 = vmatprep.mubr.f32.mxu0 0.0
  %219 = vmatmul.mubr.f32.gmra.mxu0 %v149
  %v220 = vpop.f32.mrf.mxu0
  %v221 = vadd.f32 %v146, %v220
  %v222 = vpop.f32.mrf.mxu0
  %223 = vmatprep.mubr.f32.mxu0 0.0
  %224 = vmatmul.mubr.f32.gmra.mxu0 %v152
  %v225 = vpop.f32.mrf.mxu0
  %v226 = vadd.f32 %v146, %v225
  %v227 = vpop.f32.mrf.mxu0
  %228 = vdwg.mxu0
  %v230 = vsel %vm45, %v125, 0
  %v233 = vsel %vm45, %v130, 0
  %v236 = vsel %vm45, %v221, 0
  %238 = vmatprep.subr.mxu0 0.0
  %239 = vmatpush1.xpose.msra.mxu0 0.0
  %240 = vmatprep.subr.mxu0 0.0
  %241 = vmatpush1.xpose.msra.mxu0 0.0
  %242 = vmatprep.subr.mxu0 0.0
  %243 = vmatpush1.xpose.msra.mxu0 0.0
  %244 = vmatprep.subr.mxu0 0.0
  %245 = vmatpush1.xpose.msra.mxu0 0.0
  %246 = vmatprep.subr.mxu0 0.0
  %247 = vmatpush1.xpose.msra.mxu0 0.0
  %248 = vmatprep.subr.mxu0 0.0
  %249 = vmatpush1.xpose.msra.mxu0 0.0
  %250 = vmatprep.subr.mxu0 0.0
  %251 = vmatpush1.xpose.msra.mxu0 0.0
  %252 = vmatprep.subr.mxu0 0.0
  %253 = vmatpush1.xpose.msra.mxu0 0.0
  %254 = vmatprep.subr.mxu0 0.0
  %255 = vmatpush1.xpose.msra.mxu0 0.0
  %256 = vmatprep.subr.mxu0 0.0
  %257 = vmatpush1.xpose.msra.mxu0 0.0
  %258 = vmatprep.subr.mxu0 0.0
  %259 = vmatpush1.xpose.msra.mxu0 0.0
  %260 = vmatprep.subr.mxu0 0.0
  %261 = vmatpush1.xpose.msra.mxu0 0.0
  %262 = vmatprep.subr.mxu0 0.0
  %263 = vmatpush1.xpose.msra.mxu0 0.0
  %264 = vmatprep.subr.mxu0 0.0
  %265 = vmatpush1.xpose.msra.mxu0 0.0
  %266 = vmatprep.subr.mxu0 0.0
  %267 = vmatpush1.xpose.msra.mxu0 0.0
  %268 = vmatprep.subr.mxu0 0.0
  %269 = vmatpush1.xpose.msra.mxu0 %v236
  %270 = vmatprep.subr.mxu0 0.0
  %271 = vmatpush2.xpose.msra.mxu0 0.0
  %272 = vmatprep.subr.mxu0 0.0
  %273 = vmatpush2.xpose.msra.mxu0 0.0
  %274 = vmatprep.subr.mxu0 0.0
  %275 = vmatpush2.xpose.msra.mxu0 0.0
  %276 = vmatprep.subr.mxu0 0.0
  %277 = vmatpush2.xpose.msra.mxu0 0.0
  %278 = vmatprep.subr.mxu0 0.0
  %279 = vmatpush2.xpose.msra.mxu0 0.0
  %280 = vmatprep.subr.mxu0 0.0
  %281 = vmatpush2.xpose.msra.mxu0 0.0
  %282 = vmatprep.subr.mxu0 0.0
  %283 = vmatpush2.xpose.msra.mxu0 0.0
  %284 = vmatprep.subr.mxu0 0.0
  %285 = vmatpush2.xpose.msra.mxu0 0.0
  %286 = vmatprep.subr.mxu0 0.0
  %287 = vmatpush2.xpose.msra.mxu0 0.0
  %288 = vmatprep.subr.mxu0 0.0
  %289 = vmatpush2.xpose.msra.mxu0 0.0
  %290 = vmatprep.subr.mxu0 0.0
  %291 = vmatpush2.xpose.msra.mxu0 0.0
  %292 = vmatprep.subr.mxu0 0.0
  %293 = vmatpush2.xpose.msra.mxu0 0.0
  %294 = vmatprep.subr.mxu0 0.0
  %295 = vmatpush2.xpose.msra.mxu0 0.0
  %296 = vmatprep.subr.mxu0 0.0
  %297 = vmatpush2.xpose.msra.mxu0 0.0
  %298 = vmatprep.subr.mxu0 0.0
  %299 = vmatpush2.xpose.msra.mxu0 0.0
  %300 = vmatprep.subr.mxu0 0.0
  %301 = vmatpush2.xpose.msra.mxu0 0.0
  %302 = vmatprep.mubr.f32.mxu0 0.0
  %303 = vmatmul.mubr.f32.gmra.mxu0 %v230
  %v304 = vpop.f32.mrf.mxu0
  %v305 = vadd.f32 0.0, %v304
  %v306 = vpop.f32.mrf.mxu0
  %307 = vmatprep.mubr.f32.mxu0 0.0
  %308 = vmatmul.mubr.f32.gmra.mxu0 %v233
  %v309 = vpop.f32.mrf.mxu0
  %v310 = vadd.f32 0.0, %v309
  %v311 = vpop.f32.mrf.mxu0
  %312 = vdwg.mxu0
  %v313 = vmul.f32 %v305, 0.17677669
  %v314 = vmul.f32 %v310, 0.17677669
  %vm315 = vcmp.gt.f32.partialorder %v40, 0.0
  %v316 = vsel %vm315, 1, 0
  %v317 = vlaneseq
  %v318 = vshrl.u32 %v317, 7
  %v319 = vsub.s32 0, %v318
  %v320 = vrot.slane %v316, %v319
  %vm321 = vcmp.eq.s32.totalorder %v320, 1
  %v322 = vsel %vm321, %v313, -1e+30
  %v323 = vsel %vm321, %v314, -1e+30
  %vm324 = vcmask 64512
  %v325 = vsel %vm324, %v322, -inf
  %326 = vmax.xlane.f32.xlu0 %v325
  %v327 = vpop.xlane.xlu0 %326
  %v328 = vsel %vm324, %v323, -inf
  %329 = vmax.xlane.f32.xlu0 %v328
  %v330 = vpop.xlane.xlu0 %329
  %v331 = vsub.f32 %v322, %v327
  %v332 = vsub.f32 %v323, %v330
  %v333 = vmul.f32 %v331, 1.442695
  %v334 = vpow.pop %v333
  %v335 = vmul.f32 %v332, 1.442695
  %v336 = vpow.pop %v335
  %v337 = vsel %vm324, %v334, 0.0
  %338 = vadd.xlane.f32.xlu0 %v337
  %v339 = vpop.xlane.xlu0 %338
  %v340 = vsel %vm324, %v336, 0.0
  %341 = vadd.xlane.f32.xlu0 %v340
  %v342 = vpop.xlane.xlu0 %341
  %v343 = vrcp.pop %v339
  %v344 = vrcp.pop %v342
  %v345 = vmul.f32 %v334, %v343
  %v346 = vmul.f32 %v336, %v344
  %v348 = vsel %vm324, %v345, 0
  %v351 = vsel %vm324, %v346, 0
  %353 = vmatprep.subr.mxu0 0.0
  %354 = vmatpush1.msra.mxu0 0.0
  %355 = vmatprep.subr.mxu0 0.0
  %356 = vmatpush1.msra.mxu0 0.0
  %357 = vmatprep.subr.mxu0 0.0
  %358 = vmatpush1.msra.mxu0 0.0
  %359 = vmatprep.subr.mxu0 0.0
  %360 = vmatpush1.msra.mxu0 0.0
  %361 = vmatprep.subr.mxu0 0.0
  %362 = vmatpush1.msra.mxu0 0.0
  %363 = vmatprep.subr.mxu0 0.0
  %364 = vmatpush1.msra.mxu0 0.0
  %365 = vmatprep.subr.mxu0 0.0
  %366 = vmatpush1.msra.mxu0 0.0
  %367 = vmatprep.subr.mxu0 0.0
  %368 = vmatpush1.msra.mxu0 0.0
  %369 = vmatprep.subr.mxu0 0.0
  %370 = vmatpush1.msra.mxu0 0.0
  %371 = vmatprep.subr.mxu0 0.0
  %372 = vmatpush1.msra.mxu0 0.0
  %373 = vmatprep.subr.mxu0 0.0
  %374 = vmatpush1.msra.mxu0 0.0
  %375 = vmatprep.subr.mxu0 0.0
  %376 = vmatpush1.msra.mxu0 0.0
  %377 = vmatprep.subr.mxu0 0.0
  %378 = vmatpush1.msra.mxu0 0.0
  %379 = vmatprep.subr.mxu0 0.0
  %380 = vmatpush1.msra.mxu0 0.0
  %381 = vmatprep.subr.mxu0 0.0
  %382 = vmatpush1.msra.mxu0 0.0
  %383 = vmatprep.subr.mxu0 0.0
  %384 = vmatpush1.msra.mxu0 %v221
  %385 = vmatprep.subr.mxu0 0.0
  %386 = vmatpush2.msra.mxu0 0.0
  %387 = vmatprep.subr.mxu0 0.0
  %388 = vmatpush2.msra.mxu0 0.0
  %389 = vmatprep.subr.mxu0 0.0
  %390 = vmatpush2.msra.mxu0 0.0
  %391 = vmatprep.subr.mxu0 0.0
  %392 = vmatpush2.msra.mxu0 0.0
  %393 = vmatprep.subr.mxu0 0.0
  %394 = vmatpush2.msra.mxu0 0.0
  %395 = vmatprep.subr.mxu0 0.0
  %396 = vmatpush2.msra.mxu0 0.0
  %397 = vmatprep.subr.mxu0 0.0
  %398 = vmatpush2.msra.mxu0 0.0
  %399 = vmatprep.subr.mxu0 0.0
  %400 = vmatpush2.msra.mxu0 0.0
  %401 = vmatprep.subr.mxu0 0.0
  %402 = vmatpush2.msra.mxu0 0.0
  %403 = vmatprep.subr.mxu0 0.0
  %404 = vmatpush2.msra.mxu0 0.0
  %405 = vmatprep.subr.mxu0 0.0
  %406 = vmatpush2.msra.mxu0 0.0
  %407 = vmatprep.subr.mxu0 0.0
  %408 = vmatpush2.msra.mxu0 0.0
  %409 = vmatprep.subr.mxu0 0.0
  %410 = vmatpush2.msra.mxu0 0.0
  %411 = vmatprep.subr.mxu0 0.0
  %412 = vmatpush2.msra.mxu0 0.0
  %413 = vmatprep.subr.mxu0 0.0
  %414 = vmatpush2.msra.mxu0 0.0
  %415 = vmatprep.subr.mxu0 0.0
  %416 = vmatpush2.msra.mxu0 0.0
  %417 = vmatprep.mubr.f32.mxu0 0.0
  %418 = vmatmul.mubr.f32.gmra.mxu0 %v348
  %v419 = vpop.f32.mrf.mxu0
  %v420 = vadd.f32 0.0, %v419
  %v421 = vpop.f32.mrf.mxu0
  %422 = vmatprep.mubr.f32.mxu0 0.0
  %423 = vmatmul.mubr.f32.gmra.mxu0 %v351
  %v424 = vpop.f32.mrf.mxu0
  %v425 = vadd.f32 0.0, %v424
  %v426 = vpop.f32.mrf.mxu0
  %427 = vdwg.mxu0
  %v428 = vadd.f32 %v125, %v420
  %v429 = vadd.f32 %v130, %v425
  %v431 = vsel %vm147, %v25, 0
  %v434 = vsel %vm147, %v26, 0
  %436 = vmatprep.subr.mxu0 0.0
  %437 = vmatpush1.msra.mxu0 0.0
  %438 = vmatprep.subr.mxu0 0.0
  %439 = vmatpush1.msra.mxu0 0.0
  %440 = vmatprep.subr.mxu0 0.0
  %441 = vmatpush1.msra.mxu0 0.0
  %442 = vmatprep.subr.mxu0 0.0
  %443 = vmatpush1.msra.mxu0 0.0
  %444 = vmatprep.subr.mxu0 0.0
  %445 = vmatpush1.msra.mxu0 0.0
  %446 = vmatprep.subr.mxu0 0.0
  %447 = vmatpush1.msra.mxu0 0.0
  %448 = vmatprep.subr.mxu0 0.0
  %449 = vmatpush1.msra.mxu0 0.0
  %450 = vmatprep.subr.mxu0 0.0
  %451 = vmatpush1.msra.mxu0 0.0
  %452 = vmatprep.subr.mxu0 0.0
  %453 = vmatpush1.msra.mxu0 0.0
  %454 = vmatprep.subr.mxu0 0.0
  %455 = vmatpush1.msra.mxu0 0.0
  %456 = vmatprep.subr.mxu0 0.0
  %457 = vmatpush1.msra.mxu0 0.0
  %458 = vmatprep.subr.mxu0 0.0
  %459 = vmatpush1.msra.mxu0 0.0
  %460 = vmatprep.subr.mxu0 0.0
  %461 = vmatpush1.msra.mxu0 0.0
  %462 = vmatprep.subr.mxu0 0.0
  %463 = vmatpush1.msra.mxu0 0.0
  %464 = vmatprep.subr.mxu0 0.0
  %465 = vmatpush1.msra.mxu0 %v429
  %466 = vmatprep.subr.mxu0 0.0
  %467 = vmatpush1.msra.mxu0 %v428
  %468 = vmatprep.subr.mxu0 0.0
  %469 = vmatpush2.msra.mxu0 0.0
  %470 = vmatprep.subr.mxu0 0.0
  %471 = vmatpush2.msra.mxu0 0.0
  %472 = vmatprep.subr.mxu0 0.0
  %473 = vmatpush2.msra.mxu0 0.0
  %474 = vmatprep.subr.mxu0 0.0
  %475 = vmatpush2.msra.mxu0 0.0
  %476 = vmatprep.subr.mxu0 0.0
  %477 = vmatpush2.msra.mxu0 0.0
  %478 = vmatprep.subr.mxu0 0.0
  %479 = vmatpush2.msra.mxu0 0.0
  %480 = vmatprep.subr.mxu0 0.0
  %481 = vmatpush2.msra.mxu0 0.0
  %482 = vmatprep.subr.mxu0 0.0
  %483 = vmatpush2.msra.mxu0 0.0
  %484 = vmatprep.subr.mxu0 0.0
  %485 = vmatpush2.msra.mxu0 0.0
  %486 = vmatprep.subr.mxu0 0.0
  %487 = vmatpush2.msra.mxu0 0.0
  %488 = vmatprep.subr.mxu0 0.0
  %489 = vmatpush2.msra.mxu0 0.0
  %490 = vmatprep.subr.mxu0 0.0
  %491 = vmatpush2.msra.mxu0 0.0
  %492 = vmatprep.subr.mxu0 0.0
  %493 = vmatpush2.msra.mxu0 0.0
  %494 = vmatprep.subr.mxu0 0.0
  %495 = vmatpush2.msra.mxu0 0.0
  %496 = vmatprep.subr.mxu0 0.0
  %497 = vmatpush2.msra.mxu0 0.0
  %498 = vmatprep.subr.mxu0 0.0
  %499 = vmatpush2.msra.mxu0 0.0
  %500 = vmatprep.mubr.f32.mxu0 0.0
  %501 = vmatmul.mubr.f32.gmra.mxu0 %v431
  %v502 = vpop.f32.mrf.mxu0
  %v503 = vadd.f32 0.0, %v502
  %v504 = vpop.f32.mrf.mxu0
  %505 = vmatprep.mubr.f32.mxu0 0.0
  %506 = vmatmul.mubr.f32.gmra.mxu0 %v434
  %v507 = vpop.f32.mrf.mxu0
  %v508 = vadd.f32 0.0, %v507
  %v509 = vpop.f32.mrf.mxu0
  %510 = vdwg.mxu0
  %v511 = vlaneseq
  %v512 = vshrl.u32 %v511, 7
  %v513 = vsub.s32 0, %v512
  %v514 = vrot.slane %v33, %v513
  %v516 = vsel %vm45, %v503, 0
  %v519 = vsel %vm45, %v508, 0
  %521 = vmatprep.subr.mxu0 0.0
  %522 = vmatpush1.msra.mxu0 0.0
  %523 = vmatprep.subr.mxu0 0.0
  %524 = vmatpush1.msra.mxu0 0.0
  %525 = vmatprep.subr.mxu0 0.0
  %526 = vmatpush1.msra.mxu0 0.0
  %527 = vmatprep.subr.mxu0 0.0
  %528 = vmatpush1.msra.mxu0 0.0
  %529 = vmatprep.subr.mxu0 0.0
  %530 = vmatpush1.msra.mxu0 0.0
  %531 = vmatprep.subr.mxu0 0.0
  %532 = vmatpush1.msra.mxu0 0.0
  %533 = vmatprep.subr.mxu0 0.0
  %534 = vmatpush1.msra.mxu0 0.0
  %535 = vmatprep.subr.mxu0 0.0
  %536 = vmatpush1.msra.mxu0 0.0
  %537 = vmatprep.subr.mxu0 0.0
  %538 = vmatpush1.msra.mxu0 0.0
  %539 = vmatprep.subr.mxu0 0.0
  %540 = vmatpush1.msra.mxu0 0.0
  %541 = vmatprep.subr.mxu0 0.0
  %542 = vmatpush1.msra.mxu0 0.0
  %543 = vmatprep.subr.mxu0 0.0
  %544 = vmatpush1.msra.mxu0 0.0
  %545 = vmatprep.subr.mxu0 0.0
  %546 = vmatpush1.msra.mxu0 %v32
  %547 = vmatprep.subr.mxu0 0.0
  %548 = vmatpush1.msra.mxu0 %v31
  %549 = vmatprep.subr.mxu0 0.0
  %550 = vmatpush1.msra.mxu0 %v30
  %551 = vmatprep.subr.mxu0 0.0
  %552 = vmatpush1.msra.mxu0 %v29
  %553 = vmatprep.subr.mxu0 0.0
  %554 = vmatpush2.msra.mxu0 0.0
  %555 = vmatprep.subr.mxu0 0.0
  %556 = vmatpush2.msra.mxu0 0.0
  %557 = vmatprep.subr.mxu0 0.0
  %558 = vmatpush2.msra.mxu0 0.0
  %559 = vmatprep.subr.mxu0 0.0
  %560 = vmatpush2.msra.mxu0 0.0
  %561 = vmatprep.subr.mxu0 0.0
  %562 = vmatpush2.msra.mxu0 0.0
  %563 = vmatprep.subr.mxu0 0.0
  %564 = vmatpush2.msra.mxu0 0.0
  %565 = vmatprep.subr.mxu0 0.0
  %566 = vmatpush2.msra.mxu0 0.0
  %567 = vmatprep.subr.mxu0 0.0
  %568 = vmatpush2.msra.mxu0 0.0
  %569 = vmatprep.subr.mxu0 0.0
  %570 = vmatpush2.msra.mxu0 0.0
  %571 = vmatprep.subr.mxu0 0.0
  %572 = vmatpush2.msra.mxu0 0.0
  %573 = vmatprep.subr.mxu0 0.0
  %574 = vmatpush2.msra.mxu0 0.0
  %575 = vmatprep.subr.mxu0 0.0
  %576 = vmatpush2.msra.mxu0 0.0
  %577 = vmatprep.subr.mxu0 0.0
  %578 = vmatpush2.msra.mxu0 0.0
  %579 = vmatprep.subr.mxu0 0.0
  %580 = vmatpush2.msra.mxu0 0.0
  %581 = vmatprep.subr.mxu0 0.0
  %582 = vmatpush2.msra.mxu0 0.0
  %583 = vmatprep.subr.mxu0 0.0
  %584 = vmatpush2.msra.mxu0 0.0
  %585 = vmatprep.mubr.f32.mxu0 0.0
  %586 = vmatmul.mubr.f32.gmra.mxu0 %v516
  %v587 = vpop.f32.mrf.mxu0
  %v588 = vadd.f32 %v514, %v587
  %v589 = vpop.f32.mrf.mxu0
  %590 = vmatprep.mubr.f32.mxu0 0.0
  %591 = vmatmul.mubr.f32.gmra.mxu0 %v519
  %v592 = vpop.f32.mrf.mxu0
  %v593 = vadd.f32 %v514, %v592
  %v594 = vpop.f32.mrf.mxu0
  %595 = vdwg.mxu0
  %v596 = vxor.u32 %v588, 2147483648
  %v597 = vxor.u32 %v593, 2147483648
  %v598 = vmul.f32 %v596, 1.442695
  %v599 = vpow.pop %v598
  %v600 = vmul.f32 %v597, 1.442695
  %v601 = vpow.pop %v600
  %v602 = vadd.f32 %v599, 1.0
  %v603 = vadd.f32 %v601, 1.0
  %v604 = vrcp.pop %v602
  %v605 = vmul.f32 1.0, %v604
  %v606 = vrcp.pop %v603
  %v607 = vmul.f32 1.0, %v606
  %610 = vrot.lane.b32.xlu0 %v588, 127
  %v611 = vpop.permute.xlu0 %610
  %612 = vrot.lane.b32.xlu0 %v593, 127
  %v613 = vpop.permute.xlu0 %612
  %v616 = vadd.f32 %v27, %v611
  %v617 = vadd.f32 %v28, %v613
  %v618 = vmul.f32 %v616, 0.0625
  %v619 = vmul.f32 %v617, 0.0625
  %v620 = vmax.f32 %v618, 0.0
  %v621 = vmax.f32 %v619, 0.0
  %v622 = vmin.f32 %v620, 1.0
  %v623 = vmin.f32 %v621, 1.0
  %626 = vrot.lane.b32.xlu0 %v622, 1
  %v627 = vpop.permute.xlu0 %626
  %628 = vrot.lane.b32.xlu0 %v623, 1
  %v629 = vpop.permute.xlu0 %628
  %vm632 = vcmask 7168
  %v633 = vsel %vm632, %v605, %v627
  %v634 = vsel %vm632, %v607, %v629
  %vm635 = vcmask 23552
  %636 = vst.msk [vmem:[%s4] sm:$0xff] %vm635, %v633
  %vm637 = vcmask 17408
  %638 = vst.msk [vmem:[%s4 + $0x8] sm:$0x3] %vm637, %v634
  %v640 = vsel %vm45, %v135, 0
  %v643 = vsel %vm45, %v140, 0
  %v646 = vsel %vm45, %v226, 0
  %648 = vmatprep.subr.mxu0 0.0
  %649 = vmatpush1.xpose.msra.mxu0 0.0
  %650 = vmatprep.subr.mxu0 0.0
  %651 = vmatpush1.xpose.msra.mxu0 0.0
  %652 = vmatprep.subr.mxu0 0.0
  %653 = vmatpush1.xpose.msra.mxu0 0.0
  %654 = vmatprep.subr.mxu0 0.0
  %655 = vmatpush1.xpose.msra.mxu0 0.0
  %656 = vmatprep.subr.mxu0 0.0
  %657 = vmatpush1.xpose.msra.mxu0 0.0
  %658 = vmatprep.subr.mxu0 0.0
  %659 = vmatpush1.xpose.msra.mxu0 0.0
  %660 = vmatprep.subr.mxu0 0.0
  %661 = vmatpush1.xpose.msra.mxu0 0.0
  %662 = vmatprep.subr.mxu0 0.0
  %663 = vmatpush1.xpose.msra.mxu0 0.0
  %664 = vmatprep.subr.mxu0 0.0
  %665 = vmatpush1.xpose.msra.mxu0 0.0
  %666 = vmatprep.subr.mxu0 0.0
  %667 = vmatpush1.xpose.msra.mxu0 0.0
  %668 = vmatprep.subr.mxu0 0.0
  %669 = vmatpush1.xpose.msra.mxu0 0.0
  %670 = vmatprep.subr.mxu0 0.0
  %671 = vmatpush1.xpose.msra.mxu0 0.0
  %672 = vmatprep.subr.mxu0 0.0
  %673 = vmatpush1.xpose.msra.mxu0 0.0
  %674 = vmatprep.subr.mxu0 0.0
  %675 = vmatpush1.xpose.msra.mxu0 0.0
  %676 = vmatprep.subr.mxu0 0.0
  %677 = vmatpush1.xpose.msra.mxu0 0.0
  %678 = vmatprep.subr.mxu0 0.0
  %679 = vmatpush1.xpose.msra.mxu0 %v646
  %680 = vmatprep.subr.mxu0 0.0
  %681 = vmatpush2.xpose.msra.mxu0 0.0
  %682 = vmatprep.subr.mxu0 0.0
  %683 = vmatpush2.xpose.msra.mxu0 0.0
  %684 = vmatprep.subr.mxu0 0.0
  %685 = vmatpush2.xpose.msra.mxu0 0.0
  %686 = vmatprep.subr.mxu0 0.0
  %687 = vmatpush2.xpose.msra.mxu0 0.0
  %688 = vmatprep.subr.mxu0 0.0
  %689 = vmatpush2.xpose.msra.mxu0 0.0
  %690 = vmatprep.subr.mxu0 0.0
  %691 = vmatpush2.xpose.msra.mxu0 0.0
  %692 = vmatprep.subr.mxu0 0.0
  %693 = vmatpush2.xpose.msra.mxu0 0.0
  %694 = vmatprep.subr.mxu0 0.0
  %695 = vmatpush2.xpose.msra.mxu0 0.0
  %696 = vmatprep.subr.mxu0 0.0
  %697 = vmatpush2.xpose.msra.mxu0 0.0
  %698 = vmatprep.subr.mxu0 0.0
  %699 = vmatpush2.xpose.msra.mxu0 0.0
  %700 = vmatprep.subr.mxu0 0.0
  %701 = vmatpush2.xpose.msra.mxu0 0.0
  %702 = vmatprep.subr.mxu0 0.0
  %703 = vmatpush2.xpose.msra.mxu0 0.0
  %704 = vmatprep.subr.mxu0 0.0
  %705 = vmatpush2.xpose.msra.mxu0 0.0
  %706 = vmatprep.subr.mxu0 0.0
  %707 = vmatpush2.xpose.msra.mxu0 0.0
  %708 = vmatprep.subr.mxu0 0.0
  %709 = vmatpush2.xpose.msra.mxu0 0.0
  %710 = vmatprep.subr.mxu0 0.0
  %711 = vmatpush2.xpose.msra.mxu0 0.0
  %712 = vmatprep.mubr.f32.mxu0 0.0
  %713 = vmatmul.mubr.f32.gmra.mxu0 %v640
  %v714 = vpop.f32.mrf.mxu0
  %v715 = vadd.f32 0.0, %v714
  %v716 = vpop.f32.mrf.mxu0
  %717 = vmatprep.mubr.f32.mxu0 0.0
  %718 = vmatmul.mubr.f32.gmra.mxu0 %v643
  %v719 = vpop.f32.mrf.mxu0
  %v720 = vadd.f32 0.0, %v719
  %v721 = vpop.f32.mrf.mxu0
  %722 = vdwg.mxu0
  %v723 = vmul.f32 %v715, 0.17677669
  %v724 = vmul.f32 %v720, 0.17677669
  %v725 = vlaneseq
  %v726 = vshrl.u32 %v725, 7
  %v727 = vsub.s32 1, %v726
  %v728 = vrot.slane %v316, %v727
  %vm729 = vcmp.eq.s32.totalorder %v728, 1
  %v730 = vsel %vm729, %v723, -1e+30
  %v731 = vsel %vm729, %v724, -1e+30
  %v732 = vsel %vm324, %v730, -inf
  %733 = vmax.xlane.f32.xlu0 %v732
  %v734 = vpop.xlane.xlu0 %733
  %v735 = vsel %vm324, %v731, -inf
  %736 = vmax.xlane.f32.xlu0 %v735
  %v737 = vpop.xlane.xlu0 %736
  %v738 = vsub.f32 %v730, %v734
  %v739 = vsub.f32 %v731, %v737
  %v740 = vmul.f32 %v738, 1.442695
  %v741 = vpow.pop %v740
  %v742 = vmul.f32 %v739, 1.442695
  %v743 = vpow.pop %v742
  %v744 = vsel %vm324, %v741, 0.0
  %745 = vadd.xlane.f32.xlu0 %v744
  %v746 = vpop.xlane.xlu0 %745
  %v747 = vsel %vm324, %v743, 0.0
  %748 = vadd.xlane.f32.xlu0 %v747
  %v749 = vpop.xlane.xlu0 %748
  %v750 = vrcp.pop %v746
  %v751 = vrcp.pop %v749
  %v752 = vmul.f32 %v741, %v750
  %v753 = vmul.f32 %v743, %v751
  %v755 = vsel %vm324, %v752, 0
  %v758 = vsel %vm324, %v753, 0
  %760 = vmatprep.subr.mxu0 0.0
  %761 = vmatpush1.msra.mxu0 0.0
  %762 = vmatprep.subr.mxu0 0.0
  %763 = vmatpush1.msra.mxu0 0.0
  %764 = vmatprep.subr.mxu0 0.0
  %765 = vmatpush1.msra.mxu0 0.0
  %766 = vmatprep.subr.mxu0 0.0
  %767 = vmatpush1.msra.mxu0 0.0
  %768 = vmatprep.subr.mxu0 0.0
  %769 = vmatpush1.msra.mxu0 0.0
  %770 = vmatprep.subr.mxu0 0.0
  %771 = vmatpush1.msra.mxu0 0.0
  %772 = vmatprep.subr.mxu0 0.0
  %773 = vmatpush1.msra.mxu0 0.0
  %774 = vmatprep.subr.mxu0 0.0
  %775 = vmatpush1.msra.mxu0 0.0
  %776 = vmatprep.subr.mxu0 0.0
  %777 = vmatpush1.msra.mxu0 0.0
  %778 = vmatprep.subr.mxu0 0.0
  %779 = vmatpush1.msra.mxu0 0.0
  %780 = vmatprep.subr.mxu0 0.0
  %781 = vmatpush1.msra.mxu0 0.0
  %782 = vmatprep.subr.mxu0 0.0
  %783 = vmatpush1.msra.mxu0 0.0
  %784 = vmatprep.subr.mxu0 0.0
  %785 = vmatpush1.msra.mxu0 0.0
  %786 = vmatprep.subr.mxu0 0.0
  %787 = vmatpush1.msra.mxu0 0.0
  %788 = vmatprep.subr.mxu0 0.0
  %789 = vmatpush1.msra.mxu0 0.0
  %790 = vmatprep.subr.mxu0 0.0
  %791 = vmatpush1.msra.mxu0 %v226
  %792 = vmatprep.subr.mxu0 0.0
  %793 = vmatpush2.msra.mxu0 0.0
  %794 = vmatprep.subr.mxu0 0.0
  %795 = vmatpush2.msra.mxu0 0.0
  %796 = vmatprep.subr.mxu0 0.0
  %797 = vmatpush2.msra.mxu0 0.0
  %798 = vmatprep.subr.mxu0 0.0
  %799 = vmatpush2.msra.mxu0 0.0
  %800 = vmatprep.subr.mxu0 0.0
  %801 = vmatpush2.msra.mxu0 0.0
  %802 = vmatprep.subr.mxu0 0.0
  %803 = vmatpush2.msra.mxu0 0.0
  %804 = vmatprep.subr.mxu0 0.0
  %805 = vmatpush2.msra.mxu0 0.0
  %806 = vmatprep.subr.mxu0 0.0
  %807 = vmatpush2.msra.mxu0 0.0
  %808 = vmatprep.subr.mxu0 0.0
  %809 = vmatpush2.msra.mxu0 0.0
  %810 = vmatprep.subr.mxu0 0.0
  %811 = vmatpush2.msra.mxu0 0.0
  %812 = vmatprep.subr.mxu0 0.0
  %813 = vmatpush2.msra.mxu0 0.0
  %814 = vmatprep.subr.mxu0 0.0
  %815 = vmatpush2.msra.mxu0 0.0
  %816 = vmatprep.subr.mxu0 0.0
  %817 = vmatpush2.msra.mxu0 0.0
  %818 = vmatprep.subr.mxu0 0.0
  %819 = vmatpush2.msra.mxu0 0.0
  %820 = vmatprep.subr.mxu0 0.0
  %821 = vmatpush2.msra.mxu0 0.0
  %822 = vmatprep.subr.mxu0 0.0
  %823 = vmatpush2.msra.mxu0 0.0
  %824 = vmatprep.mubr.f32.mxu0 0.0
  %825 = vmatmul.mubr.f32.gmra.mxu0 %v755
  %v826 = vpop.f32.mrf.mxu0
  %v827 = vadd.f32 0.0, %v826
  %v828 = vpop.f32.mrf.mxu0
  %829 = vmatprep.mubr.f32.mxu0 0.0
  %830 = vmatmul.mubr.f32.gmra.mxu0 %v758
  %v831 = vpop.f32.mrf.mxu0
  %v832 = vadd.f32 0.0, %v831
  %v833 = vpop.f32.mrf.mxu0
  %834 = vdwg.mxu0
  %v835 = vadd.f32 %v135, %v827
  %v836 = vadd.f32 %v140, %v832
  %837 = vmatprep.subr.mxu0 0.0
  %838 = vmatpush1.msra.mxu0 0.0
  %839 = vmatprep.subr.mxu0 0.0
  %840 = vmatpush1.msra.mxu0 0.0
  %841 = vmatprep.subr.mxu0 0.0
  %842 = vmatpush1.msra.mxu0 0.0
  %843 = vmatprep.subr.mxu0 0.0
  %844 = vmatpush1.msra.mxu0 0.0
  %845 = vmatprep.subr.mxu0 0.0
  %846 = vmatpush1.msra.mxu0 0.0
  %847 = vmatprep.subr.mxu0 0.0
  %848 = vmatpush1.msra.mxu0 0.0
  %849 = vmatprep.subr.mxu0 0.0
  %850 = vmatpush1.msra.mxu0 0.0
  %851 = vmatprep.subr.mxu0 0.0
  %852 = vmatpush1.msra.mxu0 0.0
  %853 = vmatprep.subr.mxu0 0.0
  %854 = vmatpush1.msra.mxu0 0.0
  %855 = vmatprep.subr.mxu0 0.0
  %856 = vmatpush1.msra.mxu0 0.0
  %857 = vmatprep.subr.mxu0 0.0
  %858 = vmatpush1.msra.mxu0 0.0
  %859 = vmatprep.subr.mxu0 0.0
  %860 = vmatpush1.msra.mxu0 0.0
  %861 = vmatprep.subr.mxu0 0.0
  %862 = vmatpush1.msra.mxu0 0.0
  %863 = vmatprep.subr.mxu0 0.0
  %864 = vmatpush1.msra.mxu0 0.0
  %865 = vmatprep.subr.mxu0 0.0
  %866 = vmatpush1.msra.mxu0 %v836
  %867 = vmatprep.subr.mxu0 0.0
  %868 = vmatpush1.msra.mxu0 %v835
  %869 = vmatprep.subr.mxu0 0.0
  %870 = vmatpush2.msra.mxu0 0.0
  %871 = vmatprep.subr.mxu0 0.0
  %872 = vmatpush2.msra.mxu0 0.0
  %873 = vmatprep.subr.mxu0 0.0
  %874 = vmatpush2.msra.mxu0 0.0
  %875 = vmatprep.subr.mxu0 0.0
  %876 = vmatpush2.msra.mxu0 0.0
  %877 = vmatprep.subr.mxu0 0.0
  %878 = vmatpush2.msra.mxu0 0.0
  %879 = vmatprep.subr.mxu0 0.0
  %880 = vmatpush2.msra.mxu0 0.0
  %881 = vmatprep.subr.mxu0 0.0
  %882 = vmatpush2.msra.mxu0 0.0
  %883 = vmatprep.subr.mxu0 0.0
  %884 = vmatpush2.msra.mxu0 0.0
  %885 = vmatprep.subr.mxu0 0.0
  %886 = vmatpush2.msra.mxu0 0.0
  %887 = vmatprep.subr.mxu0 0.0
  %888 = vmatpush2.msra.mxu0 0.0
  %889 = vmatprep.subr.mxu0 0.0
  %890 = vmatpush2.msra.mxu0 0.0
  %891 = vmatprep.subr.mxu0 0.0
  %892 = vmatpush2.msra.mxu0 0.0
  %893 = vmatprep.subr.mxu0 0.0
  %894 = vmatpush2.msra.mxu0 0.0
  %895 = vmatprep.subr.mxu0 0.0
  %896 = vmatpush2.msra.mxu0 0.0
  %897 = vmatprep.subr.mxu0 0.0
  %898 = vmatpush2.msra.mxu0 0.0
  %899 = vmatprep.subr.mxu0 0.0
  %900 = vmatpush2.msra.mxu0 0.0
  %901 = vmatprep.mubr.f32.mxu0 0.0
  %902 = vmatmul.mubr.f32.gmra.mxu0 %v431
  %v903 = vpop.f32.mrf.mxu0
  %v904 = vadd.f32 0.0, %v903
  %v905 = vpop.f32.mrf.mxu0
  %906 = vmatprep.mubr.f32.mxu0 0.0
  %907 = vmatmul.mubr.f32.gmra.mxu0 %v434
  %v908 = vpop.f32.mrf.mxu0
  %v909 = vadd.f32 0.0, %v908
  %v910 = vpop.f32.mrf.mxu0
  %911 = vdwg.mxu0
  %v913 = vsel %vm45, %v904, 0
  %v916 = vsel %vm45, %v909, 0
  %918 = vmatprep.subr.mxu0 0.0
  %919 = vmatpush1.msra.mxu0 0.0
  %920 = vmatprep.subr.mxu0 0.0
  %921 = vmatpush1.msra.mxu0 0.0
  %922 = vmatprep.subr.mxu0 0.0
  %923 = vmatpush1.msra.mxu0 0.0
  %924 = vmatprep.subr.mxu0 0.0
  %925 = vmatpush1.msra.mxu0 0.0
  %926 = vmatprep.subr.mxu0 0.0
  %927 = vmatpush1.msra.mxu0 0.0
  %928 = vmatprep.subr.mxu0 0.0
  %929 = vmatpush1.msra.mxu0 0.0
  %930 = vmatprep.subr.mxu0 0.0
  %931 = vmatpush1.msra.mxu0 0.0
  %932 = vmatprep.subr.mxu0 0.0
  %933 = vmatpush1.msra.mxu0 0.0
  %934 = vmatprep.subr.mxu0 0.0
  %935 = vmatpush1.msra.mxu0 0.0
  %936 = vmatprep.subr.mxu0 0.0
  %937 = vmatpush1.msra.mxu0 0.0
  %938 = vmatprep.subr.mxu0 0.0
  %939 = vmatpush1.msra.mxu0 0.0
  %940 = vmatprep.subr.mxu0 0.0
  %941 = vmatpush1.msra.mxu0 0.0
  %942 = vmatprep.subr.mxu0 0.0
  %943 = vmatpush1.msra.mxu0 %v32
  %944 = vmatprep.subr.mxu0 0.0
  %945 = vmatpush1.msra.mxu0 %v31
  %946 = vmatprep.subr.mxu0 0.0
  %947 = vmatpush1.msra.mxu0 %v30
  %948 = vmatprep.subr.mxu0 0.0
  %949 = vmatpush1.msra.mxu0 %v29
  %950 = vmatprep.subr.mxu0 0.0
  %951 = vmatpush2.msra.mxu0 0.0
  %952 = vmatprep.subr.mxu0 0.0
  %953 = vmatpush2.msra.mxu0 0.0
  %954 = vmatprep.subr.mxu0 0.0
  %955 = vmatpush2.msra.mxu0 0.0
  %956 = vmatprep.subr.mxu0 0.0
  %957 = vmatpush2.msra.mxu0 0.0
  %958 = vmatprep.subr.mxu0 0.0
  %959 = vmatpush2.msra.mxu0 0.0
  %960 = vmatprep.subr.mxu0 0.0
  %961 = vmatpush2.msra.mxu0 0.0
  %962 = vmatprep.subr.mxu0 0.0
  %963 = vmatpush2.msra.mxu0 0.0
  %964 = vmatprep.subr.mxu0 0.0
  %965 = vmatpush2.msra.mxu0 0.0
  %966 = vmatprep.subr.mxu0 0.0
  %967 = vmatpush2.msra.mxu0 0.0
  %968 = vmatprep.subr.mxu0 0.0
  %969 = vmatpush2.msra.mxu0 0.0
  %970 = vmatprep.subr.mxu0 0.0
  %971 = vmatpush2.msra.mxu0 0.0
  %972 = vmatprep.subr.mxu0 0.0
  %973 = vmatpush2.msra.mxu0 0.0
  %974 = vmatprep.subr.mxu0 0.0
  %975 = vmatpush2.msra.mxu0 0.0
  %976 = vmatprep.subr.mxu0 0.0
  %977 = vmatpush2.msra.mxu0 0.0
  %978 = vmatprep.subr.mxu0 0.0
  %979 = vmatpush2.msra.mxu0 0.0
  %980 = vmatprep.subr.mxu0 0.0
  %981 = vmatpush2.msra.mxu0 0.0
  %982 = vmatprep.mubr.f32.mxu0 0.0
  %983 = vmatmul.mubr.f32.gmra.mxu0 %v913
  %v984 = vpop.f32.mrf.mxu0
  %v985 = vadd.f32 %v514, %v984
  %v986 = vpop.f32.mrf.mxu0
  %987 = vmatprep.mubr.f32.mxu0 0.0
  %988 = vmatmul.mubr.f32.gmra.mxu0 %v916
  %v989 = vpop.f32.mrf.mxu0
  %v990 = vadd.f32 %v514, %v989
  %v991 = vpop.f32.mrf.mxu0
  %992 = vdwg.mxu0
  %v993 = vxor.u32 %v985, 2147483648
  %v994 = vxor.u32 %v990, 2147483648
  %v995 = vmul.f32 %v993, 1.442695
  %v996 = vpow.pop %v995
  %v997 = vmul.f32 %v994, 1.442695
  %v998 = vpow.pop %v997
  %v999 = vadd.f32 %v996, 1.0
  %v1000 = vadd.f32 %v998, 1.0
  %v1001 = vrcp.pop %v999
  %v1002 = vmul.f32 1.0, %v1001
  %v1003 = vrcp.pop %v1000
  %v1004 = vmul.f32 1.0, %v1003
  %1007 = vrot.lane.b32.xlu0 %v985, 127
  %v1008 = vpop.permute.xlu0 %1007
  %1009 = vrot.lane.b32.xlu0 %v990, 127
  %v1010 = vpop.permute.xlu0 %1009
  %v1013 = vadd.f32 %v27, %v1008
  %v1014 = vadd.f32 %v28, %v1010
  %v1015 = vmul.f32 %v1013, 0.0625
  %v1016 = vmul.f32 %v1014, 0.0625
  %v1017 = vmax.f32 %v1015, 0.0
  %v1018 = vmax.f32 %v1016, 0.0
  %v1019 = vmin.f32 %v1017, 1.0
  %v1020 = vmin.f32 %v1018, 1.0
  %1023 = vrot.lane.b32.xlu0 %v1019, 1
  %v1024 = vpop.permute.xlu0 %1023
  %1025 = vrot.lane.b32.xlu0 %v1020, 1
  %v1026 = vpop.permute.xlu0 %1025
  %v1029 = vsel %vm632, %v1002, %v1024
  %v1030 = vsel %vm632, %v1004, %v1026
  %s1031 = scalar_lea.vmem %s4, 16
  %1032 = vst.msk [vmem:[%s1031] sm:$0xff] %vm635, %v1029
  %1033 = vst.msk [vmem:[%s1031 + $0x8] sm:$0x3] %vm637, %v1030
  // Predicated region
  $region18: #{tpu_custom_call.1} parent=0 // pred_check
    _
  $region19: #{tpu_custom_call.1} parent=0 // pred_check_branch
    %1035 = sbr.rel (0) target = $region21
  $region20: #{tpu_custom_call.1} parent=0 // pred_region
    _
  $region21: #{tpu_custom_call.1} parent=0 // pred_fallthru
    _
  // Predicated region
  $region22: #{tpu_custom_call.1} parent=0 // pred_check
    _
  $region23: #{tpu_custom_call.1} parent=0 // pred_check_branch
    %1037 = sbr.rel (0) target = $region25
  $region24: #{tpu_custom_call.1} parent=0 // pred_region
    _
  $region25: #{tpu_custom_call.1} parent=0 // pred_fallthru
    _

</llo_original>
